<compile_context>
chip_gen: v7x
topology: tpu7x:2x2x1
jax: 0.10.0
libtpu: 0.0.40
codegen_flags: <defaults>
</compile_context>

<pallas_src>
import jax
import jax.numpy as jnp
from jax.experimental import pallas as pl
from jax.experimental.pallas import tpu as pltpu


def text_generator_v2_forward(input_ids) -> str:
    """Exact semantics of TextGeneratorV2.forward: constant string, no device work."""
    # TODO(synk): returning a Python constant string has no tensor/Pallas
    # equivalent; the forward issues no device dispatch at all.
    del input_ids
    return 'generated text'


def identity(input_ids: jax.Array) -> jax.Array:
    """Identity over input_ids: elided entirely (no kernel, no HBM traffic)."""
    return input_ids


# ----------------------------------------------------------------------------
# Debug-only Pallas path: one raw HBM -> HBM DMA of input_ids.
# Kept only so the Pallas plumbing for this module stays testable on-TPU.
# ----------------------------------------------------------------------------

def _hbm_copy_kernel(ids_hbm_ref, out_hbm_ref, sem):
    # Single DMA-engine transfer; never touches VMEM, so there is no tile-size
    # or scoped-VMEM-limit tuning needed on v5e / v6e / v7x.
    cp = pltpu.make_async_copy(ids_hbm_ref, out_hbm_ref, sem)
    cp.start()
    cp.wait()


def _debug_hbm_copy(input_ids: jax.Array) -> jax.Array:
    nbytes = input_ids.size * input_ids.dtype.itemsize
    return pl.pallas_call(
        _hbm_copy_kernel,
        out_shape=jax.ShapeDtypeStruct(input_ids.shape, input_ids.dtype),
        in_specs=[pl.BlockSpec(memory_space=pl.ANY)],
        out_specs=pl.BlockSpec(memory_space=pl.ANY),
        scratch_shapes=[pltpu.SemaphoreType.DMA(())],
        # Purely mem-bound custom call (read + write of the array): tell XLA's
        # scheduler so it can overlap surrounding ops when this debug path is
        # embedded in a larger jit.
        cost_estimate=pl.CostEstimate(
            flops=0, transcendentals=0, bytes_accessed=2 * nbytes),
    )(input_ids)


_debug_hbm_copy_jit = jax.jit(_debug_hbm_copy)


if __name__ == "__main__":
    # TextGeneratorV2 has no parameters (empty __init__), so nothing to init.
    key = jax.random.PRNGKey(0)
    batch, seq, vocab = 2, 8, 32
    input_ids = jax.random.randint(key, (batch, seq), 0, vocab, dtype=jnp.int32)

    # Forward: pure Python constant, zero device dispatch (matches reference).
    text = text_generator_v2_forward(input_ids)
    assert text == 'generated text', f"unexpected output: {text!r}"

    # Recommended identity path: a true no-op — same buffer, no kernel launch.
    assert identity(input_ids) is input_ids

    # Exercise the (debug-only) HBM->HBM DMA kernel once and verify it.
    copied = jax.block_until_ready(_debug_hbm_copy_jit(input_ids))
    assert (jax.device_get(copied) == jax.device_get(input_ids)).all(), \
        "debug HBM copy mismatch"

    print("KERNEL_OK")
</pallas_src>

<mosaic_0001>
module attributes {stable_mosaic.version = 11 : i64} {
  func.func @_hbm_copy_kernel(%arg0: memref<2x8xi32, #tpu.memory_space<any>>, %arg1: memref<2x8xi32, #tpu.memory_space<any>>, %arg2: memref<!tpu.dma_semaphore, #tpu.memory_space<semaphore_mem>>) attributes {dimension_semantics = [], scalar_prefetch = 0 : i64, scratch_operands = 1 : i64, tpu.core_type = #tpu.core_type<tc>} {
    tpu.enqueue_dma source(%arg0 : memref<2x8xi32, #tpu.memory_space<any>>) target(%arg1 : memref<2x8xi32, #tpu.memory_space<any>>) target_semaphore(%arg2 : memref<!tpu.dma_semaphore, #tpu.memory_space<semaphore_mem>>)
    tpu.wait_dma2 semaphore(%arg2 : memref<!tpu.dma_semaphore, #tpu.memory_space<semaphore_mem>>) src(%arg0 : memref<2x8xi32, #tpu.memory_space<any>>) dst(%arg1 : memref<2x8xi32, #tpu.memory_space<any>>)
    return
  }
}

</mosaic_0001>

<llo_original>
// kernel: _debug_hbm_copy.1
$region0: #{_debug_hbm_copy.1}
  #allocation0 [shape = 'u32[]', space=smem, size = 0x4, offset = 0x4, fixed_abs, tag = 'smem constant byte address 0x4 - core index']
  #allocation1 [shape = 'u32[144,128]{1,0:T(1,128)}', space=vmem, size = 0x12000, scoped, tag = 'internal scratch']
  #allocation2 [shape = 's32[1]{0}', space=sflag, size = 0x4, scoped, tag = 'scratch operand']
  #allocation3 [shape = 's32[]', space=sflag, size = 0x4, offset = 0, fixed_abs, tag = 'sflag constant byte address 0x0 - dummy sync flag']
  #allocation4 [shape = 'u32[0]{0}', space=smem, size = 0, offset = 0, fixed_abs, tag = 'smem constant byte address 0x0 - null']
  %s0 = inlined_call_operand.hbm [shape: s32[2,8], index: 0, kind: input, shape index: {}]
  %s1 = inlined_call_operand.hbm [shape: s32[2,8], index: 1, kind: output, shape index: {}]
  %s2 = sld [smem:[#allocation0]]
  $region2: #{_debug_hbm_copy.1} parent=0
    _
  %s4 = ssub.s32 1, %s2
  %s5 = scalar_select 0, %s4, %s2
  %s7 = sshll.u32 1, 14
  %s8 = sxor.u32 4294967295, %s7
  %s11 = sshll.u32 3, 24
  %s12 = sxor.u32 4294967295, %s11
  %s13 = sand.u32 0, %s12
  %s15 = sor.u32 %s13, 0
  %18 = dma.general %s0, 32, %s1, [#allocation2], [#allocation3], [#allocation4], %s15, 0
  %s19 = smul.u32 2, 1
  %s20 = sshll.u32 %s19, 4
  %21 = dma.done [#allocation2], %s20
  %22 = vsyncmov [#allocation2]
  %s23 = vpop.sfrf %22
  %p24 = scmp.eq.s32.totalorder %s23, 0
  %p25 = pneg %p24
  %27 = shalt.err (%p25)

</llo_original>
